<compile_context>
chip_gen: v6e
topology: v6e:2x2x1
jax: 0.10.0
libtpu: 0.0.40
codegen_flags: <defaults>
</compile_context>

<pallas_src>
import functools
import math

import jax
import jax.numpy as jnp
from jax.experimental import pallas as pl
from jax.experimental.pallas import tpu as pltpu


def _largest_divisor_tile(n, candidates=(512, 256, 128)):
    """Largest preferred tile (descending) that divides n; else full extent."""
    for c in sorted(candidates, reverse=True):
        if n % c == 0:
            return c
    return n


def _gcn_kernel(x_ref, adj_ref, w_ref, *rest, has_bias, acc_in_out):
    # x_ref:   (tk, F_in)    rows of `input` belonging to this reduction tile
    # adj_ref: (tm, tk)      row/column tile of adjacency for the current batch
    # w_ref:   (F_in, F_pad) weight, lane-padded to a multiple of 128
    # b_ref:   (1, F_pad)    only present if has_bias
    # o_ref:   (tm, F_pad)   output row tile (block index is k-invariant)
    # acc_ref: (tm, F_pad)   f32 scratch accumulator (only if output != f32)
    idx = 0
    if has_bias:
        b_ref = rest[idx]
        idx += 1
    else:
        b_ref = None
    o_ref = rest[idx]
    idx += 1
    acc_ref = o_ref if acc_in_out else rest[idx]

    k = pl.program_id(2)
    nk = pl.num_programs(2)

    @pl.when(k == 0)
    def _():
        acc_ref[...] = jnp.zeros_like(acc_ref)

    # support for this k-slice, computed inline (no cache, no stateful axes).
    support = jnp.dot(x_ref[...], w_ref[...], preferred_element_type=jnp.float32)
    acc_ref[...] += jnp.dot(
        adj_ref[...],
        support.astype(adj_ref.dtype),
        preferred_element_type=jnp.float32,
    )

    if has_bias or not acc_in_out:
        @pl.when(k == nk - 1)
        def _():
            out = acc_ref[...]
            if has_bias:
                out = out + b_ref[...].astype(out.dtype)
            o_ref[...] = out.astype(o_ref.dtype)


def graph_convolution(x, adj, weight, bias=None, *, compute_dtype=None):
    """x: (B, N, F_in), adj: (B, N, N), weight: (F_in, F_out), bias: (F_out,)|None."""
    B, N, F_in = x.shape
    F_in_w, F_out = weight.shape
    assert F_in_w == F_in and adj.shape == (B, N, N)

    out_dtype = x.dtype
    if compute_dtype is not None:
        # bf16 MXU inputs; accumulation stays f32 via preferred_element_type.
        x = x.astype(compute_dtype)
        adj = adj.astype(compute_dtype)
        weight = weight.astype(compute_dtype)

    # Lane-dense output: pad the feature axis to a multiple of 128.
    F_pad = 128 * pl.cdiv(F_out, 128)
    if F_pad != F_out:
        weight = jnp.pad(weight, ((0, 0), (0, F_pad - F_out)))

    has_bias = bias is not None
    if has_bias:
        b2d = bias.astype(weight.dtype).reshape(1, F_out)
        if F_pad != F_out:
            b2d = jnp.pad(b2d, ((0, 0), (0, F_pad - F_out)))

    # Pad N to a multiple of 128 so adj/output tiles stay (8,128)-aligned and
    # tm/tk can be large.  Zero adj columns x zero support rows => padded
    # region cannot perturb real rows; padded output rows are sliced off.
    N_orig = N
    if N >= 128 and N % 128 != 0:
        N_new = 128 * pl.cdiv(N, 128)
        x = jnp.pad(x, ((0, 0), (0, N_new - N), (0, 0)))
        adj = jnp.pad(adj, ((0, 0), (0, N_new - N), (0, N_new - N)))
        N = N_new

    tm = _largest_divisor_tile(N)   # output row tile
    tk = _largest_divisor_tile(N)   # adj-column / reduction tile

    itemsize = jnp.dtype(x.dtype).itemsize
    out_itemsize = jnp.dtype(out_dtype).itemsize
    acc_in_out = out_dtype == jnp.float32   # accumulate directly into o_ref

    # Generation-aware VMEM cap (~80% of physical per-core VMEM).
    try:
        vmem_cap = int(pltpu.get_tpu_info().vmem_capacity_bytes * 0.8)
    except Exception:  # pragma: no cover - conservative fallback
        vmem_cap = 48 * 2**20

    def vmem_est(tm_, tk_):
        return (
            2 * tk_ * F_in * itemsize                 # x tile (double-buffered)
            + 2 * tm_ * tk_ * itemsize                # adj tile (double-buffered)
            + 2 * F_in * F_pad * itemsize             # weight (2 default buffers)
            + (2 * F_pad * itemsize if has_bias else 0)
            + 2 * tm_ * F_pad * out_itemsize          # output tile (double-buffered)
            + (0 if acc_in_out else tm_ * F_pad * 4)  # f32 accumulator
        )

    # Shrink tiles only if the working set would not fit comfortably
    # (mostly a v7x concern with its 64 MiB of VMEM per TensorCore).
    budget = vmem_cap // 2
    while vmem_est(tm, tk) > budget and tm > 128 and N % (tm // 2) == 0:
        tm //= 2
    while vmem_est(tm, tk) > budget and tk > 128 and N % (tk // 2) == 0:
        tk //= 2

    n_i = N // tm
    n_k = N // tk
    vmem_limit = int(min(vmem_cap, max(32 * 2**20, 2 * vmem_est(tm, tk))))

    in_specs = [
        pl.BlockSpec((pl.Squeezed(), tk, F_in), lambda b, i, k: (b, k, 0)),
        pl.BlockSpec((pl.Squeezed(), tm, tk), lambda b, i, k: (b, i, k)),
        pl.BlockSpec((F_in, F_pad), lambda b, i, k: (0, 0)),
    ]
    inputs = [x, adj, weight]
    if has_bias:
        in_specs.append(pl.BlockSpec((1, F_pad), lambda b, i, k: (0, 0)))
        inputs.append(b2d)

    scratch_shapes = []
    if not acc_in_out:
        scratch_shapes.append(pltpu.VMEM((tm, F_pad), jnp.float32))

    cost = pl.CostEstimate(
        flops=2 * B * N * F_pad * (n_i * F_in + N),
        transcendentals=0,
        bytes_accessed=(
            n_i * x.size * itemsize          # x re-read once per row tile
            + adj.size * itemsize
            + weight.size * itemsize
            + B * N * F_pad * out_itemsize
        ),
    )

    kernel = functools.partial(_gcn_kernel, has_bias=has_bias, acc_in_out=acc_in_out)

    out_padded = pl.pallas_call(
        kernel,
        out_shape=jax.ShapeDtypeStruct((B, N, F_pad), out_dtype),
        grid_spec=pltpu.PrefetchScalarGridSpec(
            num_scalar_prefetch=0,
            grid=(B, n_i, n_k),
            in_specs=in_specs,
            out_specs=pl.BlockSpec(
                (pl.Squeezed(), tm, F_pad), lambda b, i, k: (b, i, 0)
            ),
            scratch_shapes=scratch_shapes,
        ),
        compiler_params=pltpu.CompilerParams(
            dimension_semantics=("parallel", "parallel", "arbitrary"),
            vmem_limit_bytes=vmem_limit,
        ),
        cost_estimate=cost,
    )(*inputs)

    out = out_padded
    if N != N_orig:
        out = out[:, :N_orig, :]
    if F_pad != F_out:
        out = out[:, :, :F_out]
    return out


def _reference(x, adj, weight, bias=None):
    ref = jnp.einsum("bnk,ko->bno", x, weight)
    ref = jnp.einsum("bnm,bmo->bno", adj, ref)
    if bias is not None:
        ref = ref + bias
    return ref


if __name__ == "__main__":
    key = jax.random.PRNGKey(0)
    keys = jax.random.split(key, 12)

    # --- Small shapes consistent with the module's forward (torch.bmm path) ---
    B, N = 2, 16
    in_features, out_features = 32, 32

    x = jax.random.normal(keys[0], (B, N, in_features), dtype=jnp.float32)
    adj = jax.random.uniform(keys[1], (B, N, N), dtype=jnp.float32)

    # uniform(-stdv, stdv) with stdv = 1/sqrt(out_features), as reset_parameters()
    stdv = 1.0 / math.sqrt(out_features)
    weight = jax.random.uniform(
        keys[2], (in_features, out_features), dtype=jnp.float32, minval=-stdv, maxval=stdv
    )
    bias = jax.random.uniform(
        keys[3], (out_features,), dtype=jnp.float32, minval=-stdv, maxval=stdv
    )

    out = jax.block_until_ready(graph_convolution(x, adj, weight, bias))
    ref = _reference(x, adj, weight, bias)
    assert jnp.allclose(out, ref, atol=1e-4, rtol=1e-4), "mismatch vs reference (bias)"

    # bias=None path (no bias DMA / add)
    out_nb = jax.block_until_ready(graph_convolution(x, adj, weight, None))
    ref_nb = _reference(x, adj, weight, None)
    assert jnp.allclose(out_nb, ref_nb, atol=1e-4, rtol=1e-4), "mismatch (no bias)"

    # bf16 compute path (adj/x in bf16, f32 accumulation) - looser tolerance.
    out_bf = jax.block_until_ready(
        graph_convolution(x, adj, weight, bias, compute_dtype=jnp.bfloat16)
    )
    assert jnp.allclose(out_bf, ref, atol=1e-1, rtol=5e-2), "mismatch (bf16 path)"

    # --- Medium shape exercising the tiled path (row tiles, k reduction,
    #     lane padding F_out=96 -> 128) ---
    B2, N2, Fi2, Fo2 = 2, 1024, 64, 96
    x2 = jax.random.normal(keys[4], (B2, N2, Fi2), dtype=jnp.float32)
    adj2 = jax.random.uniform(keys[5], (B2, N2, N2), dtype=jnp.float32)
    stdv2 = 1.0 / math.sqrt(Fo2)
    w2 = jax.random.uniform(keys[6], (Fi2, Fo2), dtype=jnp.float32, minval=-stdv2, maxval=stdv2)
    b2 = jax.random.uniform(keys[7], (Fo2,), dtype=jnp.float32, minval=-stdv2, maxval=stdv2)

    out2 = jax.block_until_ready(graph_convolution(x2, adj2, w2, b2))
    ref2 = _reference(x2, adj2, w2, b2)
    assert jnp.allclose(out2, ref2, atol=1e-2, rtol=1e-3), "mismatch vs reference (tiled)"

    # --- Non-128-multiple N exercising the wrapper-side N padding path ---
    B3, N3, Fi3, Fo3 = 2, 200, 48, 64
    x3 = jax.random.normal(keys[8], (B3, N3, Fi3), dtype=jnp.float32)
    adj3 = jax.random.uniform(keys[9], (B3, N3, N3), dtype=jnp.float32)
    stdv3 = 1.0 / math.sqrt(Fo3)
    w3 = jax.random.uniform(keys[10], (Fi3, Fo3), dtype=jnp.float32, minval=-stdv3, maxval=stdv3)
    b3 = jax.random.uniform(keys[11], (Fo3,), dtype=jnp.float32, minval=-stdv3, maxval=stdv3)

    out3 = jax.block_until_ready(graph_convolution(x3, adj3, w3, b3))
    ref3 = _reference(x3, adj3, w3, b3)
    assert jnp.allclose(out3, ref3, atol=1e-2, rtol=1e-3), "mismatch vs reference (padded N)"

    print("KERNEL_OK")
</pallas_src>

<mosaic_0001>
module attributes {stable_mosaic.version = 11 : i64} {
  func.func @_gcn_kernel(%arg0: i32, %arg1: i32, %arg2: i32, %arg3: memref<1x16x32xf32, #tpu.memory_space<vmem>>, %arg4: memref<1x16x16xf32, #tpu.memory_space<vmem>>, %arg5: memref<32x128xf32, #tpu.memory_space<vmem>>, %arg6: memref<1x128xf32, #tpu.memory_space<vmem>>, %arg7: memref<1x16x128xf32, #tpu.memory_space<vmem>>) attributes {dimension_semantics = [#tpu.dimension_semantics<parallel>, #tpu.dimension_semantics<parallel>, #tpu.dimension_semantics<arbitrary>], iteration_bounds = array<i64: 2, 1, 1>, scalar_prefetch = 0 : i64, scratch_operands = 0 : i64, tpu.core_type = #tpu.core_type<tc>, window_params = [{transform_indices = @transform_0, window_bounds = array<i64: 1, 16, 32>}, {transform_indices = @transform_1, window_bounds = array<i64: 1, 16, 16>}, {pipeline_mode = #tpu.pipeline_mode<synchronous>, transform_indices = @transform_2, window_bounds = array<i64: 32, 128>}, {pipeline_mode = #tpu.pipeline_mode<synchronous>, transform_indices = @transform_3, window_bounds = array<i64: 1, 128>}, {transform_indices = @transform_4, window_bounds = array<i64: 1, 16, 128>}]} {
    %c0_i32 = arith.constant 0 : i32
    %0 = arith.cmpi eq, %arg2, %c0_i32 : i32
    %1 = arith.extui %0 : i1 to i32
    %c0_i32_0 = arith.constant 0 : i32
    %2 = arith.cmpi ne, %1, %c0_i32_0 : i32
    scf.if %2 {
      %cst_17 = arith.constant 0.000000e+00 : f32
      %19 = vector.broadcast %cst_17 : f32 to vector<16x128xf32>
      %c0_18 = arith.constant 0 : index
      %c0_19 = arith.constant 0 : index
      %c0_20 = arith.constant 0 : index
      %20 = vector.load %arg7[%c0_18, %c0_19, %c0_20] : memref<1x16x128xf32, #tpu.memory_space<vmem>>, vector<1x16x128xf32>
      %21 = vector.shape_cast %20 : vector<1x16x128xf32> to vector<16x128xf32>
      %22 = vector.shape_cast %19 : vector<16x128xf32> to vector<1x16x128xf32>
      tpu.vector_store %arg7[%c0_18, %c0_19, %c0_20], %22 {strides = array<i32>} : memref<1x16x128xf32, #tpu.memory_space<vmem>>, vector<1x16x128xf32>,
    } else {
    }
    %c0 = arith.constant 0 : index
    %c0_1 = arith.constant 0 : index
    %c0_2 = arith.constant 0 : index
    %3 = vector.load %arg3[%c0, %c0_1, %c0_2] : memref<1x16x32xf32, #tpu.memory_space<vmem>>, vector<1x16x32xf32>
    %4 = vector.shape_cast %3 : vector<1x16x32xf32> to vector<16x32xf32>
    %c0_3 = arith.constant 0 : index
    %c0_4 = arith.constant 0 : index
    %5 = vector.load %arg5[%c0_3, %c0_4] : memref<32x128xf32, #tpu.memory_space<vmem>>, vector<32x128xf32>
    %cst = arith.constant dense<0.000000e+00> : vector<16x128xf32>
    %6 = tpu.matmul %4, %5, %cst {dimension_numbers = #tpu.dot_dimension_numbers<[1], [0], [0], [1], [0, 0, 1, 1], [], []>} : vector<16x32xf32>, vector<32x128xf32>, vector<16x128xf32> -> vector<16x128xf32>
    %c0_5 = arith.constant 0 : index
    %c0_6 = arith.constant 0 : index
    %c0_7 = arith.constant 0 : index
    %7 = vector.load %arg7[%c0_5, %c0_6, %c0_7] : memref<1x16x128xf32, #tpu.memory_space<vmem>>, vector<1x16x128xf32>
    %8 = vector.shape_cast %7 : vector<1x16x128xf32> to vector<16x128xf32>
    %c0_8 = arith.constant 0 : index
    %c0_9 = arith.constant 0 : index
    %c0_10 = arith.constant 0 : index
    %9 = vector.load %arg4[%c0_8, %c0_9, %c0_10] : memref<1x16x16xf32, #tpu.memory_space<vmem>>, vector<1x16x16xf32>
    %10 = vector.shape_cast %9 : vector<1x16x16xf32> to vector<16x16xf32>
    %cst_11 = arith.constant dense<0.000000e+00> : vector<16x128xf32>
    %11 = tpu.matmul %10, %6, %cst_11 {dimension_numbers = #tpu.dot_dimension_numbers<[1], [0], [0], [1], [0, 0, 1, 1], [], []>} : vector<16x16xf32>, vector<16x128xf32>, vector<16x128xf32> -> vector<16x128xf32>
    %12 = arith.addf %8, %11 : vector<16x128xf32>
    %c0_12 = arith.constant 0 : index
    %c0_13 = arith.constant 0 : index
    %c0_14 = arith.constant 0 : index
    %13 = vector.load %arg7[%c0_12, %c0_13, %c0_14] : memref<1x16x128xf32, #tpu.memory_space<vmem>>, vector<1x16x128xf32>
    %14 = vector.shape_cast %13 : vector<1x16x128xf32> to vector<16x128xf32>
    %15 = vector.shape_cast %12 : vector<16x128xf32> to vector<1x16x128xf32>
    tpu.vector_store %arg7[%c0_12, %c0_13, %c0_14], %15 {strides = array<i32>} : memref<1x16x128xf32, #tpu.memory_space<vmem>>, vector<1x16x128xf32>,
    %c0_i32_15 = arith.constant 0 : i32
    %16 = arith.cmpi eq, %arg2, %c0_i32_15 : i32
    %17 = arith.extui %16 : i1 to i32
    %c0_i32_16 = arith.constant 0 : i32
    %18 = arith.cmpi ne, %17, %c0_i32_16 : i32
    scf.if %18 {
      %c0_17 = arith.constant 0 : index
      %c0_18 = arith.constant 0 : index
      %c0_19 = arith.constant 0 : index
      %19 = vector.load %arg7[%c0_17, %c0_18, %c0_19] : memref<1x16x128xf32, #tpu.memory_space<vmem>>, vector<1x16x128xf32>
      %20 = vector.shape_cast %19 : vector<1x16x128xf32> to vector<16x128xf32>
      %c0_20 = arith.constant 0 : index
      %c0_21 = arith.constant 0 : index
      %21 = vector.load %arg6[%c0_20, %c0_21] : memref<1x128xf32, #tpu.memory_space<vmem>>, vector<1x128xf32>
      %22 = vector.broadcast %21 : vector<1x128xf32> to vector<16x128xf32>
      %23 = arith.addf %20, %22 : vector<16x128xf32>
      %c0_22 = arith.constant 0 : index
      %c0_23 = arith.constant 0 : index
      %c0_24 = arith.constant 0 : index
      %24 = vector.load %arg7[%c0_22, %c0_23, %c0_24] : memref<1x16x128xf32, #tpu.memory_space<vmem>>, vector<1x16x128xf32>
      %25 = vector.shape_cast %24 : vector<1x16x128xf32> to vector<16x128xf32>
      %26 = vector.shape_cast %23 : vector<16x128xf32> to vector<1x16x128xf32>
      tpu.vector_store %arg7[%c0_22, %c0_23, %c0_24], %26 {strides = array<i32>} : memref<1x16x128xf32, #tpu.memory_space<vmem>>, vector<1x16x128xf32>,
    } else {
    }
    return
  }
  func.func @transform_0(%arg0: i32, %arg1: i32, %arg2: i32) -> (i32, i32, i32) {
    %c0_i32 = arith.constant 0 : i32
    %c0_i32_0 = arith.constant 0 : i32
    return %arg0, %arg2, %c0_i32 : i32, i32, i32
  }
  func.func @transform_1(%arg0: i32, %arg1: i32, %arg2: i32) -> (i32, i32, i32) {
    %c0_i32 = arith.constant 0 : i32
    return %arg0, %arg1, %arg2 : i32, i32, i32
  }
  func.func @transform_2(%arg0: i32, %arg1: i32, %arg2: i32) -> (i32, i32) {
    %c0_i32 = arith.constant 0 : i32
    %c0_i32_0 = arith.constant 0 : i32
    %c0_i32_1 = arith.constant 0 : i32
    return %c0_i32, %c0_i32_0 : i32, i32
  }
  func.func @transform_3(%arg0: i32, %arg1: i32, %arg2: i32) -> (i32, i32) {
    %c0_i32 = arith.constant 0 : i32
    %c0_i32_0 = arith.constant 0 : i32
    %c0_i32_1 = arith.constant 0 : i32
    return %c0_i32, %c0_i32_0 : i32, i32
  }
  func.func @transform_4(%arg0: i32, %arg1: i32, %arg2: i32) -> (i32, i32, i32) {
    %c0_i32 = arith.constant 0 : i32
    %c0_i32_0 = arith.constant 0 : i32
    return %arg0, %arg1, %c0_i32 : i32, i32, i32
  }
}

</mosaic_0001>

<llo_original>
// kernel: tpu_custom_call.1
$region0: #{tpu_custom_call.1}
  #allocation0 [shape = 'u32[]', space=smem, size = 0x4, offset = 0x4, fixed_abs, tag = 'smem constant byte address 0x4 - core index']
  #allocation1 [shape = 'u32[144,128]{1,0:T(1,128)}', space=vmem, size = 0x12000, scoped, tag = 'internal scratch']
  %s0 = inlined_call_operand.hbm [shape: f32[2,16,32], index: 0, kind: input, shape index: {}]
  %s1 = inlined_call_operand.hbm [shape: f32[2,16,16], index: 1, kind: input, shape index: {}]
  %s2 = inlined_call_operand.hbm [shape: f32[32,128], index: 2, kind: input, shape index: {}]
  %s3 = inlined_call_operand.vmem [shape: f32[1,128], index: 3, kind: input, shape index: {}]
  %s4 = inlined_call_operand.hbm [shape: f32[2,16,128], index: 4, kind: output, shape index: {}]
  %s5 = sld [smem:[#allocation0]]
  $region69: #{tpu_custom_call.1} parent=0
    _
  %s7 = ssub.s32 1, %s5
  %s8 = scalar_select 0, %s7, %s5
  $region1: #{tpu_custom_call.1} parent=0
    #allocation2 [shape = 'u8[16384]{0}', space=vmem, size = 0x4000, scoped, tag = 'input window, operand 0']
    #allocation3 [shape = 's32[2]{0}', space=sflag, size = 0x8, scoped, tag = 'scoped memory for tpu_custom_call.1']
    #allocation4 [shape = 's32[2]{0}', space=sflag, size = 0x8, scoped, tag = 'scoped memory for tpu_custom_call.1']
    #allocation5 [shape = 'u8[16384]{0}', space=vmem, size = 0x4000, scoped, tag = 'input window, operand 1']
    #allocation6 [shape = 's32[2]{0}', space=sflag, size = 0x8, scoped, tag = 'scoped memory for tpu_custom_call.1']
    #allocation7 [shape = 'u8[16384]{0}', space=vmem, size = 0x4000, scoped, tag = 'input window, operand 2, single buffered']
    #allocation8 [shape = 'u8[16384]{0}', space=vmem, size = 0x4000, scoped, tag = 'output window, operand 0']
    %9 = vsyncpa [#allocation3], 0
    %s10 = scalar_lea.sflag [#allocation3], 1
    %11 = vsyncpa %s10, 0
    %12 = vsyncpa [#allocation6], 0
    %s13 = scalar_lea.sflag [#allocation6], 1
    %14 = vsyncpa %s13, 0
    %15 = vsyncpa [#allocation4], 0
    %s16 = scalar_lea.sflag [#allocation4], 1
    %17 = vsyncpa %s16, 0
    loop: start=0, step=1, limit=4
    $region2: #{tpu_custom_call.1} parent=1 // loop_pre_header
      _
    $region3: #{tpu_custom_call.1} parent=1 // loop_header
      %s19 = sphi 0, %s23
      %p20 = scmp.ge.s32.totalorder %s19, 4
      %s26 = sphi 0, %s45
      %s27 = sphi 0, %s41
      %s28 = sphi 0, %s37
      %s29 = sphi 0, %s26
      %s30 = sphi 0, %s27
      %s31 = sphi 0, %s28
      %s32 = sphi 0, %s29
      %s33 = sphi 0, %s30
      %s34 = sphi 0, %s31
      %s50 = sphi 0, %s52
      %s53 = sphi 0, %s50
      %s54 = sphi 0, %s53
      %s70 = sphi 0, %s54
      %s80 = sphi 0, %s82
      %s83 = sphi 0, %s80
      %s84 = sphi 0, %s83
      %s100 = sphi 0, %s84
      %s104 = sphi 0, %s104
      %s106 = sphi 0, %s104
      %s107 = sphi 0, %s106
      %s121 = sphi 0, %s107
      %s125 = sphi 0, %s125
      %s127 = sphi 0, %s125
      %s128 = sphi 0, %s127
      %s142 = sphi 0, %s128
      %s150 = sphi 0, %s152
      %s153 = sphi 0, %s150
      %s154 = sphi 0, %s153
      %s170 = sphi 0, %s154
    $region4: #{tpu_custom_call.1} parent=1 // loop_header_branch
      %22 = sbr.rel (%p20) target = $region8
    $region5: #{tpu_custom_call.1} parent=1 // loop_body
      %s24 = ssub.s32 %s19, 1
      %s25 = ssub.s32 %s19, 2
      %s35 = sadd.s32 1, %s28
      %p36 = scmp.ge.s32.totalorder %s35, 1
      %s37 = scalar_select %p36, 0, %s35
      %s38 = sadd.s32 1, %s27
      %s39 = scalar_select %p36, %s38, %s27
      %p40 = scmp.ge.s32.totalorder %s39, 1
      %s41 = scalar_select %p40, 0, %s39
      %s42 = sadd.s32 1, %s26
      %s43 = scalar_select %p40, %s42, %s26
      %p44 = scmp.ge.s32.totalorder %s43, 2
      %s45 = scalar_select %p44, 0, %s43
      %s46 = ssub.s32 %s26, %s45
      %s47 = ssub.s32 %s28, %s37
      %s48 = sor.u32 %s46, %s47
      %p49 = scmp.eq.s32.totalorder %s48, 0
      %s51 = sadd.s32 %s50, 1
      %s52 = scalar_select %p49, %s50, %s51
      %p55 = pneg %p49
      %p56 = scmp.eq.s32.totalorder %s19, 1
      %p57 = por %p55, %p56
      %p58 = scmp.ne.s32.totalorder %s50, %s53
      %p59 = scmp.eq.s32.totalorder %s19, 0
      %p60 = por %p58, %p59
      %p61 = scmp.ne.s32.totalorder %s50, %s53
      %p62 = scmp.eq.s32.totalorder %s24, 1
      %p63 = por %p61, %p62
      %p64 = scmp.ne.s32.totalorder %s53, %s54
      %p65 = scmp.eq.s32.totalorder %s24, 0
      %p66 = por %p64, %p65
      %p67 = scmp.ne.s32.totalorder %s53, %s54
      %p68 = scmp.eq.s32.totalorder %s25, 1
      %p69 = por %p67, %p68
      %p71 = scmp.ne.s32.totalorder %s54, %s70
      %p72 = scmp.eq.s32.totalorder %s25, 0
      %p73 = por %p71, %p72
      %s74 = ssub.s32 %s26, %s45
      %s75 = ssub.s32 %s27, %s41
      %s76 = sor.u32 %s74, %s75
      %s77 = ssub.s32 %s28, %s37
      %s78 = sor.u32 %s76, %s77
      %p79 = scmp.eq.s32.totalorder %s78, 0
      %s81 = sadd.s32 %s80, 1
      %s82 = scalar_select %p79, %s80, %s81
      %p85 = pneg %p79
      %p86 = scmp.eq.s32.totalorder %s19, 1
      %p87 = por %p85, %p86
      %p88 = scmp.ne.s32.totalorder %s80, %s83
      %p89 = scmp.eq.s32.totalorder %s19, 0
      %p90 = por %p88, %p89
      %p91 = scmp.ne.s32.totalorder %s80, %s83
      %p92 = scmp.eq.s32.totalorder %s24, 1
      %p93 = por %p91, %p92
      %p94 = scmp.ne.s32.totalorder %s83, %s84
      %p95 = scmp.eq.s32.totalorder %s24, 0
      %p96 = por %p94, %p95
      %p97 = scmp.ne.s32.totalorder %s83, %s84
      %p98 = scmp.eq.s32.totalorder %s25, 1
      %p99 = por %p97, %p98
      %p101 = scmp.ne.s32.totalorder %s84, %s100
      %p102 = scmp.eq.s32.totalorder %s25, 0
      %p103 = por %p101, %p102
      %s105 = sadd.s32 %s104, 1
      %p108 = scmp.eq.s32.totalorder %s19, 1
      %p109 = scmp.ne.s32.totalorder %s104, %s106
      %p110 = scmp.eq.s32.totalorder %s19, 0
      %p111 = por %p109, %p110
      %p112 = scmp.ne.s32.totalorder %s104, %s106
      %p113 = scmp.eq.s32.totalorder %s24, 1
      %p114 = por %p112, %p113
      %p115 = scmp.ne.s32.totalorder %s106, %s107
      %p116 = scmp.eq.s32.totalorder %s24, 0
      %p117 = por %p115, %p116
      %p118 = scmp.ne.s32.totalorder %s106, %s107
      %p119 = scmp.eq.s32.totalorder %s25, 1
      %p120 = por %p118, %p119
      %p122 = scmp.ne.s32.totalorder %s107, %s121
      %p123 = scmp.eq.s32.totalorder %s25, 0
      %p124 = por %p122, %p123
      %s126 = sadd.s32 %s125, 1
      %p129 = scmp.eq.s32.totalorder %s19, 1
      %p130 = scmp.ne.s32.totalorder %s125, %s127
      %p131 = scmp.eq.s32.totalorder %s19, 0
      %p132 = por %p130, %p131
      %p133 = scmp.ne.s32.totalorder %s125, %s127
      %p134 = scmp.eq.s32.totalorder %s24, 1
      %p135 = por %p133, %p134
      %p136 = scmp.ne.s32.totalorder %s127, %s128
      %p137 = scmp.eq.s32.totalorder %s24, 0
      %p138 = por %p136, %p137
      %p139 = scmp.ne.s32.totalorder %s127, %s128
      %p140 = scmp.eq.s32.totalorder %s25, 1
      %p141 = por %p139, %p140
      %p143 = scmp.ne.s32.totalorder %s128, %s142
      %p144 = scmp.eq.s32.totalorder %s25, 0
      %p145 = por %p143, %p144
      %s146 = ssub.s32 %s26, %s45
      %s147 = ssub.s32 %s27, %s41
      %s148 = sor.u32 %s146, %s147
      %p149 = scmp.eq.s32.totalorder %s148, 0
      %s151 = sadd.s32 %s150, 1
      %s152 = scalar_select %p149, %s150, %s151
      %p155 = pneg %p149
      %p156 = scmp.eq.s32.totalorder %s19, 1
      %p157 = por %p155, %p156
      %p158 = scmp.ne.s32.totalorder %s150, %s153
      %p159 = scmp.eq.s32.totalorder %s19, 0
      %p160 = por %p158, %p159
      %p161 = scmp.ne.s32.totalorder %s150, %s153
      %p162 = scmp.eq.s32.totalorder %s24, 1
      %p163 = por %p161, %p162
      %p164 = scmp.ne.s32.totalorder %s153, %s154
      %p165 = scmp.eq.s32.totalorder %s24, 0
      %p166 = por %p164, %p165
      %p167 = scmp.ne.s32.totalorder %s153, %s154
      %p168 = scmp.eq.s32.totalorder %s25, 1
      %p169 = por %p167, %p168
      %p171 = scmp.ne.s32.totalorder %s154, %s170
      %p172 = scmp.eq.s32.totalorder %s25, 0
      %p173 = por %p171, %p172
      %p174 = scmp.le.s32.totalorder 1, %s19
      %p175 = scmp.lt.s32.totalorder %s19, 3
      %p176 = pnand %p174, %p175
      %p177 = pneg %p176
      // Predicated region
      $region9: #{tpu_custom_call.1} parent=5 // pred_check
        _
      $region10: #{tpu_custom_call.1} parent=5 // pred_check_branch
        %179 = sbr.rel (%p176) target = $region12
      $region11: #{tpu_custom_call.1} parent=5 // pred_region
        %s180 = ssub.s32 %s19, 1
        // Predicated region
        $region13: #{tpu_custom_call.1} parent=11 // pred_check
          %p181 = pneg %p117
        $region14: #{tpu_custom_call.1} parent=11 // pred_check_branch
          %183 = sbr.rel (%p181) target = $region16
        $region15: #{tpu_custom_call.1} parent=11 // pred_region
          %s185 = ssub.s32 512, 512
          %186 = vsyncadd [#allocation6], %s185
          %s187 = sshll.u32 [#allocation7], 4
          %s188 = int_to_ptr.vmem [resolvable:$true] %s187
          %193 = dma.hbm_to_vmem [thread:$0]  %s2, 512, %s188, [#allocation6], 128, 128, 8
        $region16: #{tpu_custom_call.1} parent=11 // pred_fallthru
          _
        // Predicated region
        $region17: #{tpu_custom_call.1} parent=11 // pred_check
          %p194 = pneg %p138
        $region18: #{tpu_custom_call.1} parent=11 // pred_check_branch
          %196 = sbr.rel (%p194) target = $region20
        $region19: #{tpu_custom_call.1} parent=11 // pred_region
          _
        $region20: #{tpu_custom_call.1} parent=11 // pred_fallthru
          _
      $region12: #{tpu_custom_call.1} parent=5 // pred_fallthru
        _
      %p197 = scmp.lt.s32.totalorder %s19, 2
      // Predicated region
      $region21: #{tpu_custom_call.1} parent=5 // pred_check
        %p198 = pneg %p197
      $region22: #{tpu_custom_call.1} parent=5 // pred_check_branch
        %200 = sbr.rel (%p198) target = $region24
      $region23: #{tpu_custom_call.1} parent=5 // pred_region
        // Predicated region
        $region25: #{tpu_custom_call.1} parent=23 // pred_check
          %p201 = pneg %p60
        $region26: #{tpu_custom_call.1} parent=23 // pred_check_branch
          %203 = sbr.rel (%p201) target = $region28
        $region27: #{tpu_custom_call.1} parent=23 // pred_region
          %s204 = sand.u32 %s50, 1
          %s205 = scalar_lea.sflag [#allocation3], %s204
          %s206 = sand.u32 %s50, 1
          %s207 = smul.addr %s206, 16
          %s208 = scalar_lea.vmem [#allocation2], %s207
          %s209 = smul.u32 2, %s28
          %s211 = ssub.s32 256, 256
          %212 = vsyncadd %s205, %s211
          %s213 = smul.addr %s26, 2
          %s214 = sadd.s32 %s209, %s213
          %s215 = smul.addr %s214, 128
          %s216 = scalar_lea.hbm %s0, %s215
          %s217 = sshll.u32 %s208, 4
          %s218 = int_to_ptr.vmem [resolvable:$true] %s217
          %223 = dma.hbm_to_vmem [thread:$0]  %s216, 256, %s218, %s205, 128, 128, 8
        $region28: #{tpu_custom_call.1} parent=23 // pred_fallthru
          _
        // Predicated region
        $region29: #{tpu_custom_call.1} parent=23 // pred_check
          %p224 = pneg %p90
        $region30: #{tpu_custom_call.1} parent=23 // pred_check_branch
          %226 = sbr.rel (%p224) target = $region32
        $region31: #{tpu_custom_call.1} parent=23 // pred_region
          %s227 = sand.u32 %s19, 1
          %s228 = scalar_lea.sflag [#allocation6], %s227
          %s229 = sand.u32 %s80, 1
          %s230 = smul.addr %s229, 16
          %s231 = scalar_lea.vmem [#allocation5], %s230
          %s232 = smul.u32 2, %s27
          %s234 = ssub.s32 256, 256
          %235 = vsyncadd %s228, %s234
          %s236 = sadd.s32 %s28, %s232
          %s237 = smul.addr %s26, 2
          %s238 = sadd.s32 %s236, %s237
          %s239 = smul.addr %s238, 128
          %s240 = scalar_lea.hbm %s1, %s239
          %s241 = sshll.u32 %s231, 4
          %s242 = int_to_ptr.vmem [resolvable:$true] %s241
          %247 = dma.hbm_to_vmem [thread:$0]  %s240, 256, %s242, %s228, 128, 128, 8
        $region32: #{tpu_custom_call.1} parent=23 // pred_fallthru
          _
      $region24: #{tpu_custom_call.1} parent=5 // pred_fallthru
        _
      %p248 = scmp.le.s32.totalorder 1, %s19
      %p249 = scmp.lt.s32.totalorder %s19, 3
      %p250 = pnand %p248, %p249
      %p251 = pneg %p250
      // Predicated region
      $region33: #{tpu_custom_call.1} parent=5 // pred_check
        _
      $region34: #{tpu_custom_call.1} parent=5 // pred_check_branch
        %253 = sbr.rel (%p250) target = $region36
      $region35: #{tpu_custom_call.1} parent=5 // pred_region
        %s254 = ssub.s32 %s19, 1
        %s255 = sand.u32 %s53, 1
        %s256 = scalar_lea.sflag [#allocation3], %s255
        %s257 = sand.u32 %s53, 1
        %s258 = smul.addr %s257, 16
        %s259 = scalar_lea.vmem [#allocation2], %s258
        // Predicated region
        $region37: #{tpu_custom_call.1} parent=35 // pred_check
          %p260 = pneg %p66
        $region38: #{tpu_custom_call.1} parent=35 // pred_check_branch
          %262 = sbr.rel (%p260) target = $region40
        $region39: #{tpu_custom_call.1} parent=35 // pred_region
          %263 = dma.done %s256, 256
        $region40: #{tpu_custom_call.1} parent=35 // pred_fallthru
          _
        %s264 = sand.u32 %s24, 1
        %s265 = scalar_lea.sflag [#allocation6], %s264
        %s266 = sand.u32 %s83, 1
        %s267 = smul.addr %s266, 16
        %s268 = scalar_lea.vmem [#allocation5], %s267
        // Predicated region
        $region41: #{tpu_custom_call.1} parent=35 // pred_check
          %p269 = pneg %p96
        $region42: #{tpu_custom_call.1} parent=35 // pred_check_branch
          %271 = sbr.rel (%p269) target = $region44
        $region43: #{tpu_custom_call.1} parent=35 // pred_region
          %272 = dma.done %s265, 256
        $region44: #{tpu_custom_call.1} parent=35 // pred_fallthru
          _
        // Predicated region
        $region45: #{tpu_custom_call.1} parent=35 // pred_check
          %p273 = pneg %p117
        $region46: #{tpu_custom_call.1} parent=35 // pred_check_branch
          %275 = sbr.rel (%p273) target = $region48
        $region47: #{tpu_custom_call.1} parent=35 // pred_region
          %276 = dma.done [#allocation6], 512
        $region48: #{tpu_custom_call.1} parent=35 // pred_fallthru
          _
        %s277 = sand.u32 %s53, 1
        %s278 = scalar_lea.sflag [#allocation3], %s277
        %s279 = sand.u32 %s53, 1
        %s280 = smul.addr %s279, 16
        %s281 = scalar_lea.vmem [#allocation2], %s280
        %p282 = pneg %p66
        %p283 = pneg %p63
        %s284 = sand.u32 %s24, 1
        %s285 = scalar_lea.sflag [#allocation6], %s284
        %s286 = sand.u32 %s83, 1
        %s287 = smul.addr %s286, 16
        %s288 = scalar_lea.vmem [#allocation5], %s287
        %p289 = pneg %p96
        %p290 = pneg %p93
        %p291 = pneg %p117
        %p292 = pneg %p114
        %p293 = pneg %p138
        %p294 = pneg %p135
        %p295 = pneg %p166
        %p296 = pneg %p163
        %s297 = sand.u32 %s153, 1
        %s298 = scalar_lea.sflag [#allocation4], %s297
        %s299 = sand.u32 %s153, 1
        %s300 = smul.addr %s299, 16
        %s301 = scalar_lea.vmem [#allocation8], %s300
        %s302 = smul.u32 2, %s31
        %s303 = smul.u32 2, %s30
        %s304 = smul.u32 2, %s30
        %p305 = scmp.eq.s32.totalorder %s31, 0
        // Predicated region
        $region49: #{tpu_custom_call.1} parent=35 // pred_check
          %p306 = pneg %p305
        $region50: #{tpu_custom_call.1} parent=35 // pred_check_branch
          %308 = sbr.rel (%p306) target = $region52
        $region51: #{tpu_custom_call.1} parent=35 // pred_region
          %309 = vst [vmem:[%s301] sm:$0xff] 0.0
          %310 = vst [vmem:[%s301 + $0x8] sm:$0xff] 0.0
        $region52: #{tpu_custom_call.1} parent=35 // pred_fallthru
          _
        %v311 = vld [vmem:[%s259] sm:$0xff]
        %v312 = vld [vmem:[%s259 + $0x8] sm:$0xff]
        %v313 = vld [vmem:[#allocation7] sm:$0xff]
        %v314 = vld [vmem:[#allocation7 + $0x8] sm:$0xff]
        %v315 = vld [vmem:[#allocation7 + $0x10] sm:$0xff]
        %v316 = vld [vmem:[#allocation7 + $0x18] sm:$0xff]
        %vm317 = vcmask 261120
        %v319 = vsel %vm317, %v311, 0
        %v322 = vsel %vm317, %v312, 0
        %324 = vmatprep.subr.mxu0 0.0
        %325 = vmatpush1.msra.mxu0 0.0
        %326 = vmatprep.subr.mxu0 0.0
        %327 = vmatpush1.msra.mxu0 0.0
        %328 = vmatprep.subr.mxu0 0.0
        %329 = vmatpush1.msra.mxu0 0.0
        %330 = vmatprep.subr.mxu0 0.0
        %331 = vmatpush1.msra.mxu0 0.0
        %332 = vmatprep.subr.mxu0 0.0
        %333 = vmatpush1.msra.mxu0 0.0
        %334 = vmatprep.subr.mxu0 0.0
        %335 = vmatpush1.msra.mxu0 0.0
        %336 = vmatprep.subr.mxu0 0.0
        %337 = vmatpush1.msra.mxu0 0.0
        %338 = vmatprep.subr.mxu0 0.0
        %339 = vmatpush1.msra.mxu0 0.0
        %340 = vmatprep.subr.mxu0 0.0
        %341 = vmatpush1.msra.mxu0 0.0
        %342 = vmatprep.subr.mxu0 0.0
        %343 = vmatpush1.msra.mxu0 0.0
        %344 = vmatprep.subr.mxu0 0.0
        %345 = vmatpush1.msra.mxu0 0.0
        %346 = vmatprep.subr.mxu0 0.0
        %347 = vmatpush1.msra.mxu0 0.0
        %348 = vmatprep.subr.mxu0 0.0
        %349 = vmatpush1.msra.mxu0 %v316
        %350 = vmatprep.subr.mxu0 0.0
        %351 = vmatpush1.msra.mxu0 %v315
        %352 = vmatprep.subr.mxu0 0.0
        %353 = vmatpush1.msra.mxu0 %v314
        %354 = vmatprep.subr.mxu0 0.0
        %355 = vmatpush1.msra.mxu0 %v313
        %356 = vmatprep.subr.mxu0 0.0
        %357 = vmatpush2.msra.mxu0 0.0
        %358 = vmatprep.subr.mxu0 0.0
        %359 = vmatpush2.msra.mxu0 0.0
        %360 = vmatprep.subr.mxu0 0.0
        %361 = vmatpush2.msra.mxu0 0.0
        %362 = vmatprep.subr.mxu0 0.0
        %363 = vmatpush2.msra.mxu0 0.0
        %364 = vmatprep.subr.mxu0 0.0
        %365 = vmatpush2.msra.mxu0 0.0
        %366 = vmatprep.subr.mxu0 0.0
        %367 = vmatpush2.msra.mxu0 0.0
        %368 = vmatprep.subr.mxu0 0.0
        %369 = vmatpush2.msra.mxu0 0.0
        %370 = vmatprep.subr.mxu0 0.0
        %371 = vmatpush2.msra.mxu0 0.0
        %372 = vmatprep.subr.mxu0 0.0
        %373 = vmatpush2.msra.mxu0 0.0
        %374 = vmatprep.subr.mxu0 0.0
        %375 = vmatpush2.msra.mxu0 0.0
        %376 = vmatprep.subr.mxu0 0.0
        %377 = vmatpush2.msra.mxu0 0.0
        %378 = vmatprep.subr.mxu0 0.0
        %379 = vmatpush2.msra.mxu0 0.0
        %380 = vmatprep.subr.mxu0 0.0
        %381 = vmatpush2.msra.mxu0 0.0
        %382 = vmatprep.subr.mxu0 0.0
        %383 = vmatpush2.msra.mxu0 0.0
        %384 = vmatprep.subr.mxu0 0.0
        %385 = vmatpush2.msra.mxu0 0.0
        %386 = vmatprep.subr.mxu0 0.0
        %387 = vmatpush2.msra.mxu0 0.0
        %388 = vmatprep.mubr.f32.mxu0 0.0
        %389 = vmatmul.mubr.f32.gmra.mxu0 %v319
        %v390 = vpop.f32.mrf.mxu0
        %v391 = vadd.f32 0.0, %v390
        %v392 = vpop.f32.mrf.mxu0
        %393 = vmatprep.mubr.f32.mxu0 0.0
        %394 = vmatmul.mubr.f32.gmra.mxu0 %v322
        %v395 = vpop.f32.mrf.mxu0
        %v396 = vadd.f32 0.0, %v395
        %v397 = vpop.f32.mrf.mxu0
        %398 = vdwg.mxu0
        %v399 = vld [vmem:[%s301] sm:$0xff]
        %v400 = vld [vmem:[%s301 + $0x8] sm:$0xff]
        %v401 = vld [vmem:[%s268] sm:$0xff]
        %v402 = vld [vmem:[%s268 + $0x8] sm:$0xff]
        %vm403 = vcmask 130048
        %v405 = vsel %vm403, %v401, 0
        %v408 = vsel %vm403, %v402, 0
        %410 = vmatprep.subr.mxu0 0.0
        %411 = vmatpush1.msra.mxu0 0.0
        %412 = vmatprep.subr.mxu0 0.0
        %413 = vmatpush1.msra.mxu0 0.0
        %414 = vmatprep.subr.mxu0 0.0
        %415 = vmatpush1.msra.mxu0 0.0
        %416 = vmatprep.subr.mxu0 0.0
        %417 = vmatpush1.msra.mxu0 0.0
        %418 = vmatprep.subr.mxu0 0.0
        %419 = vmatpush1.msra.mxu0 0.0
        %420 = vmatprep.subr.mxu0 0.0
        %421 = vmatpush1.msra.mxu0 0.0
        %422 = vmatprep.subr.mxu0 0.0
        %423 = vmatpush1.msra.mxu0 0.0
        %424 = vmatprep.subr.mxu0 0.0
        %425 = vmatpush1.msra.mxu0 0.0
        %426 = vmatprep.subr.mxu0 0.0
        %427 = vmatpush1.msra.mxu0 0.0
        %428 = vmatprep.subr.mxu0 0.0
        %429 = vmatpush1.msra.mxu0 0.0
        %430 = vmatprep.subr.mxu0 0.0
        %431 = vmatpush1.msra.mxu0 0.0
        %432 = vmatprep.subr.mxu0 0.0
        %433 = vmatpush1.msra.mxu0 0.0
        %434 = vmatprep.subr.mxu0 0.0
        %435 = vmatpush1.msra.mxu0 0.0
        %436 = vmatprep.subr.mxu0 0.0
        %437 = vmatpush1.msra.mxu0 0.0
        %438 = vmatprep.subr.mxu0 0.0
        %439 = vmatpush1.msra.mxu0 %v396
        %440 = vmatprep.subr.mxu0 0.0
        %441 = vmatpush1.msra.mxu0 %v391
        %442 = vmatprep.subr.mxu0 0.0
        %443 = vmatpush2.msra.mxu0 0.0
        %444 = vmatprep.subr.mxu0 0.0
        %445 = vmatpush2.msra.mxu0 0.0
        %446 = vmatprep.subr.mxu0 0.0
        %447 = vmatpush2.msra.mxu0 0.0
        %448 = vmatprep.subr.mxu0 0.0
        %449 = vmatpush2.msra.mxu0 0.0
        %450 = vmatprep.subr.mxu0 0.0
        %451 = vmatpush2.msra.mxu0 0.0
        %452 = vmatprep.subr.mxu0 0.0
        %453 = vmatpush2.msra.mxu0 0.0
        %454 = vmatprep.subr.mxu0 0.0
        %455 = vmatpush2.msra.mxu0 0.0
        %456 = vmatprep.subr.mxu0 0.0
        %457 = vmatpush2.msra.mxu0 0.0
        %458 = vmatprep.subr.mxu0 0.0
        %459 = vmatpush2.msra.mxu0 0.0
        %460 = vmatprep.subr.mxu0 0.0
        %461 = vmatpush2.msra.mxu0 0.0
        %462 = vmatprep.subr.mxu0 0.0
        %463 = vmatpush2.msra.mxu0 0.0
        %464 = vmatprep.subr.mxu0 0.0
        %465 = vmatpush2.msra.mxu0 0.0
        %466 = vmatprep.subr.mxu0 0.0
        %467 = vmatpush2.msra.mxu0 0.0
        %468 = vmatprep.subr.mxu0 0.0
        %469 = vmatpush2.msra.mxu0 0.0
        %470 = vmatprep.subr.mxu0 0.0
        %471 = vmatpush2.msra.mxu0 0.0
        %472 = vmatprep.subr.mxu0 0.0
        %473 = vmatpush2.msra.mxu0 0.0
        %474 = vmatprep.mubr.f32.mxu0 0.0
        %475 = vmatmul.mubr.f32.gmra.mxu0 %v405
        %v476 = vpop.f32.mrf.mxu0
        %v477 = vadd.f32 0.0, %v476
        %v478 = vpop.f32.mrf.mxu0
        %479 = vmatprep.mubr.f32.mxu0 0.0
        %480 = vmatmul.mubr.f32.gmra.mxu0 %v408
        %v481 = vpop.f32.mrf.mxu0
        %v482 = vadd.f32 0.0, %v481
        %v483 = vpop.f32.mrf.mxu0
        %484 = vdwg.mxu0
        %v485 = vadd.f32 %v399, %v477
        %v486 = vadd.f32 %v400, %v482
        %487 = vst [vmem:[%s301] sm:$0xff] %v485
        %488 = vst [vmem:[%s301 + $0x8] sm:$0xff] %v486
        // Predicated region
        $region53: #{tpu_custom_call.1} parent=35 // pred_check
          %p489 = pneg %p305
        $region54: #{tpu_custom_call.1} parent=35 // pred_check_branch
          %491 = sbr.rel (%p489) target = $region56
        $region55: #{tpu_custom_call.1} parent=35 // pred_region
          %v492 = vld [vmem:[%s301] sm:$0xff]
          %v493 = vld [vmem:[%s301 + $0x8] sm:$0xff]
          %v494 = vld [vmem:[%s3] sm:$0x1]
          %v496 = vlaneseq
          %v497 = vshrl.u32 %v496, 7
          %v498 = vsub.s32 0, %v497
          %v499 = vrot.slane %v494, %v498
          %v501 = vadd.f32 %v492, %v499
          %v502 = vadd.f32 %v493, %v499
          %503 = vst [vmem:[%s301] sm:$0xff] %v501
          %504 = vst [vmem:[%s301 + $0x8] sm:$0xff] %v502
        $region56: #{tpu_custom_call.1} parent=35 // pred_fallthru
          _
        %s505 = sand.u32 %s153, 1
        %s506 = scalar_lea.sflag [#allocation4], %s505
        %s507 = sand.u32 %s153, 1
        %s508 = smul.addr %s507, 16
        %s509 = scalar_lea.vmem [#allocation8], %s508
        // Predicated region
        $region57: #{tpu_custom_call.1} parent=35 // pred_check
          %p510 = pneg %p163
        $region58: #{tpu_custom_call.1} parent=35 // pred_check_branch
          %512 = sbr.rel (%p510) target = $region60
        $region59: #{tpu_custom_call.1} parent=35 // pred_region
          %s513 = smul.u32 2, %s30
          %s515 = ssub.s32 256, 256
          %516 = vsyncadd %s506, %s515
          %s517 = smul.addr %s29, 2
          %s518 = sadd.s32 %s513, %s517
          %s519 = smul.addr %s518, 128
          %s520 = scalar_lea.hbm %s4, %s519
          %s521 = sshll.u32 %s509, 4
          %s522 = int_to_ptr.vmem [resolvable:$true] %s521
          %527 = dma.vmem_to_hbm [thread:$0]  %s522, 256, %s520, %s506, 128, 128, 8
        $region60: #{tpu_custom_call.1} parent=35 // pred_fallthru
          _
      $region36: #{tpu_custom_call.1} parent=5 // pred_fallthru
        _
      %p528 = scmp.le.s32.totalorder 2, %s19
      // Predicated region
      $region61: #{tpu_custom_call.1} parent=5 // pred_check
        %p529 = pneg %p528
      $region62: #{tpu_custom_call.1} parent=5 // pred_check_branch
        %531 = sbr.rel (%p529) target = $region64
      $region63: #{tpu_custom_call.1} parent=5 // pred_region
        %s532 = ssub.s32 %s19, 2
        // Predicated region
        $region65: #{tpu_custom_call.1} parent=63 // pred_check
          %p533 = pneg %p169
        $region66: #{tpu_custom_call.1} parent=63 // pred_check_branch
          %535 = sbr.rel (%p533) target = $region68
        $region67: #{tpu_custom_call.1} parent=63 // pred_region
          %s536 = sand.u32 %s154, 1
          %s537 = scalar_lea.sflag [#allocation4], %s536
          %s538 = sand.u32 %s154, 1
          %s539 = smul.addr %s538, 16
          %s540 = scalar_lea.vmem [#allocation8], %s539
          %541 = dma.done %s537, 256
        $region68: #{tpu_custom_call.1} parent=63 // pred_fallthru
          _
      $region64: #{tpu_custom_call.1} parent=5 // pred_fallthru
        _
    $region6: #{tpu_custom_call.1} parent=1 // loop_footer
      %s23 = sadd.s32 1, %s19
    $region7: #{tpu_custom_call.1} parent=1 // loop_footer_branch
      %18 = sbr.rel target = $region3
    $region8: #{tpu_custom_call.1} parent=1 // loop_exit
      _
    %542 = vsyncpa [#allocation3], 1
    %s543 = scalar_lea.sflag [#allocation3], 1
    %544 = vsyncpa %s543, 1
    %545 = vsyncpa [#allocation6], 1
    %s546 = scalar_lea.sflag [#allocation6], 1
    %547 = vsyncpa %s546, 1
    %548 = vsyncpa [#allocation4], 1
    %s549 = scalar_lea.sflag [#allocation4], 1
    %550 = vsyncpa %s549, 1

</llo_original>
